<compile_context>
chip_gen: v5e
topology: v5e:2x2
jax: 0.10.0
libtpu: 0.0.40
codegen_flags: <defaults>
</compile_context>

<pallas_src>
import functools

import jax
import jax.numpy as jnp
from jax.experimental import pallas as pl
from jax.experimental.pallas import tpu as pltpu


def _masked_nll_kernel(*refs, has_weight):
    if has_weight:
        pred_ref, target_ref, mask_ref, weight_ref, out_ref, num_acc, den_acc = refs
    else:
        pred_ref, target_ref, mask_ref, out_ref, num_acc, den_acc = refs
        weight_ref = None

    j = pl.program_id(0)

    @pl.when(j == 0)
    def _():
        num_acc[0, 0] = 0.0
        den_acc[0, 0] = 0.0

    pred = pred_ref[...].astype(jnp.float32)      # (C, bn) log-probs, C on sublanes
    tgt = target_ref[...]                         # (1, bn) int32
    msk = mask_ref[...].astype(jnp.float32)       # (1, bn)

    c, bn = pred.shape
    class_ids = jax.lax.broadcasted_iota(jnp.int32, (c, bn), 0)
    eq = class_ids == tgt                         # (C, bn) one-hot predicate (no f32 temp)

    # pred[i, target_i] via select + sublane reduction -> (1, bn)
    picked = jnp.sum(jnp.where(eq, pred, 0.0), axis=0, keepdims=True)

    if has_weight:
        w = weight_ref[...].astype(jnp.float32)                          # (C, 1)
        w_t = jnp.sum(jnp.where(eq, w, 0.0), axis=0, keepdims=True)      # weight[t_i] (1, bn)
        num_acc[0, 0] += -jnp.sum(picked * msk * w_t)
        den_acc[0, 0] += jnp.sum(w_t * msk)
    else:
        num_acc[0, 0] += -jnp.sum(picked * msk)
        den_acc[0, 0] += jnp.sum(msk)

    @pl.when(j == pl.num_programs(0) - 1)
    def _():
        out_ref[0, 0] = num_acc[0, 0] / den_acc[0, 0]


def masked_nll_loss(pred, target, mask, weight=None, *, block_n=512):
    """pred: (N, C) log-probs (any float dtype), target: (N,) int, mask: N elements."""
    n, c = pred.shape
    has_weight = weight is not None

    # Lane-dense layout: classes on sublanes, utterances on the 128-wide lane axis.
    pred_t = pred.T                                         # (C, N), native dtype
    target_l = target.reshape(1, n).astype(jnp.int32)       # (1, N)
    mask_l = mask.reshape(1, n).astype(jnp.float32)         # (1, N)

    # Block over N; pad N up to a multiple of the lane block (padded cols have mask=0,
    # so they contribute nothing to numerator or denominator).
    block_n = max(128, (block_n // 128) * 128)
    block_n = min(block_n, pl.cdiv(n, 128) * 128)
    n_pad = pl.cdiv(n, block_n) * block_n
    if n_pad != n:
        pad = n_pad - n
        pred_t = jnp.pad(pred_t, ((0, 0), (0, pad)))
        target_l = jnp.pad(target_l, ((0, 0), (0, pad)))
        mask_l = jnp.pad(mask_l, ((0, 0), (0, pad)))

    grid = (n_pad // block_n,)

    in_specs = [
        pl.BlockSpec((c, block_n), lambda j: (0, j)),       # pred   (C, bn)
        pl.BlockSpec((1, block_n), lambda j: (0, j)),       # target (1, bn)
        pl.BlockSpec((1, block_n), lambda j: (0, j)),       # mask   (1, bn)
    ]
    args = [pred_t, target_l, mask_l]
    if has_weight:
        in_specs.append(pl.BlockSpec((c, 1), lambda j: (0, 0)))   # weight (C, 1), resident
        args.append(weight.reshape(c, 1).astype(jnp.float32))

    kernel = functools.partial(_masked_nll_kernel, has_weight=has_weight)

    out = pl.pallas_call(
        kernel,
        out_shape=jax.ShapeDtypeStruct((1, 1), jnp.float32),
        grid_spec=pltpu.PrefetchScalarGridSpec(
            num_scalar_prefetch=0,
            grid=grid,
            in_specs=in_specs,
            out_specs=pl.BlockSpec((1, 1), lambda j: (0, 0),
                                   memory_space=pltpu.MemorySpace.SMEM),
            scratch_shapes=[
                pltpu.SMEM((1, 1), jnp.float32),   # numerator accumulator
                pltpu.SMEM((1, 1), jnp.float32),   # denominator accumulator
            ],
        ),
        compiler_params=pltpu.CompilerParams(
            dimension_semantics=("arbitrary",),        # reduction over N blocks
            vmem_limit_bytes=32 * 1024 * 1024,         # safe on v5e/v6e/v7x scoped budgets
        ),
    )(*args)
    return out[0, 0]


def _reference(pred, target, mask, weight=None):
    n, c = pred.shape
    pred_f = pred.astype(jnp.float32)
    mask_f = mask.reshape(-1).astype(jnp.float32)
    picked = jnp.take_along_axis(pred_f, target.reshape(n, 1), axis=1)[:, 0]
    if weight is None:
        return -jnp.sum(picked * mask_f) / jnp.sum(mask_f)
    w_t = weight.astype(jnp.float32)[target]
    return -jnp.sum(w_t * picked * mask_f) / jnp.sum(w_t * mask_f)


if __name__ == "__main__":
    key = jax.random.PRNGKey(0)
    k1, k2, k3, k4, k5, k6, k7 = jax.random.split(key, 7)

    # ---- small IEMOCAP-like shapes: batch=2, seq=8, 6 emotion classes -> N=16 ----
    batch, seq, n_classes = 2, 8, 6
    n = batch * seq

    logits = jax.random.normal(k1, (n, n_classes), jnp.float32)
    pred = jax.nn.log_softmax(logits, axis=-1)
    target = jax.random.randint(k2, (n,), 0, n_classes, jnp.int32)
    mask = (jax.random.uniform(k3, (batch, seq)) > 0.3).astype(jnp.float32)
    class_weight = jax.random.uniform(k4, (n_classes,), jnp.float32) + 0.5

    # weight=None path
    loss = masked_nll_loss(pred, target, mask, weight=None)
    jax.block_until_ready(loss)
    ref = _reference(pred, target, mask, weight=None)
    assert jnp.allclose(loss, ref, rtol=1e-5, atol=1e-5), (loss, ref)

    # weighted path
    loss_w = masked_nll_loss(pred, target, mask, weight=class_weight)
    jax.block_until_ready(loss_w)
    ref_w = _reference(pred, target, mask, weight=class_weight)
    assert jnp.allclose(loss_w, ref_w, rtol=1e-5, atol=1e-5), (loss_w, ref_w)

    # ---- larger N to exercise the gridded accumulation path (grid > 1) ----
    n_big = 300
    logits_b = jax.random.normal(k5, (n_big, n_classes), jnp.float32)
    pred_b = jax.nn.log_softmax(logits_b, axis=-1)
    target_b = jax.random.randint(k6, (n_big,), 0, n_classes, jnp.int32)
    mask_b = (jax.random.uniform(k7, (n_big,)) > 0.3).astype(jnp.float32)

    loss_b = masked_nll_loss(pred_b, target_b, mask_b, weight=class_weight, block_n=128)
    jax.block_until_ready(loss_b)
    ref_b = _reference(pred_b, target_b, mask_b, weight=class_weight)
    assert jnp.allclose(loss_b, ref_b, rtol=1e-5, atol=1e-5), (loss_b, ref_b)

    print("KERNEL_OK")
</pallas_src>

<mosaic_0001>
module attributes {stable_mosaic.version = 11 : i64} {
  func.func @_masked_nll_kernel(%arg0: i32, %arg1: memref<6x128xf32, #tpu.memory_space<vmem>>, %arg2: memref<1x128xi32, #tpu.memory_space<vmem>>, %arg3: memref<1x128xf32, #tpu.memory_space<vmem>>, %arg4: memref<1x1xf32, #tpu.memory_space<smem>>, %arg5: memref<1x1xf32, #tpu.memory_space<smem>>, %arg6: memref<1x1xf32, #tpu.memory_space<smem>>) attributes {dimension_semantics = [#tpu.dimension_semantics<arbitrary>], iteration_bounds = array<i64: 1>, scalar_prefetch = 0 : i64, scratch_operands = 2 : i64, tpu.core_type = #tpu.core_type<tc>, window_params = [{transform_indices = @transform_0, window_bounds = array<i64: 6, 128>}, {transform_indices = @transform_1, window_bounds = array<i64: 1, 128>}, {transform_indices = @transform_2, window_bounds = array<i64: 1, 128>}, {transform_indices = @transform_3, window_bounds = array<i64: 1, 1>}]} {
    %c0_i32 = arith.constant 0 : i32
    %0 = arith.cmpi eq, %arg0, %c0_i32 : i32
    %1 = arith.extui %0 : i1 to i32
    %c0_i32_0 = arith.constant 0 : i32
    %2 = arith.cmpi ne, %1, %c0_i32_0 : i32
    scf.if %2 {
      %cst_20 = arith.constant 0.000000e+00 : f32
      %c0_21 = arith.constant 0 : index
      %c0_22 = arith.constant 0 : index
      %32 = memref.load %arg5[%c0_21, %c0_22] : memref<1x1xf32, #tpu.memory_space<smem>>
      memref.store %cst_20, %arg5[%c0_21, %c0_22] : memref<1x1xf32, #tpu.memory_space<smem>>
      %cst_23 = arith.constant 0.000000e+00 : f32
      %c0_24 = arith.constant 0 : index
      %c0_25 = arith.constant 0 : index
      %33 = memref.load %arg6[%c0_24, %c0_25] : memref<1x1xf32, #tpu.memory_space<smem>>
      memref.store %cst_23, %arg6[%c0_24, %c0_25] : memref<1x1xf32, #tpu.memory_space<smem>>
    } else {
    }
    %c0 = arith.constant 0 : index
    %c0_1 = arith.constant 0 : index
    %3 = vector.load %arg1[%c0, %c0_1] : memref<6x128xf32, #tpu.memory_space<vmem>>, vector<6x128xf32>
    %c0_2 = arith.constant 0 : index
    %c0_3 = arith.constant 0 : index
    %4 = vector.load %arg2[%c0_2, %c0_3] : memref<1x128xi32, #tpu.memory_space<vmem>>, vector<1x128xi32>
    %c0_4 = arith.constant 0 : index
    %c0_5 = arith.constant 0 : index
    %5 = vector.load %arg3[%c0_4, %c0_5] : memref<1x128xf32, #tpu.memory_space<vmem>>, vector<1x128xf32>
    %6 = tpu.iota {dimensions = array<i32: 0>} : vector<6x128xi32>
    %7 = vector.broadcast %4 : vector<1x128xi32> to vector<6x128xi32>
    %8 = arith.cmpi eq, %6, %7 : vector<6x128xi32>
    %cst = arith.constant 0.000000e+00 : f32
    %9 = vector.broadcast %cst : f32 to vector<6x128xf32>
    %10 = arith.select %8, %3, %9 : vector<6x128xi1>, vector<6x128xf32>
    %cst_6 = arith.constant dense<0.000000e+00> : vector<128xf32>
    %11 = vector.multi_reduction <add>, %10, %cst_6 [0] : vector<6x128xf32> to vector<128xf32>
    %12 = vector.shape_cast %11 : vector<128xf32> to vector<1x128xf32>
    %c0_7 = arith.constant 0 : index
    %c0_8 = arith.constant 0 : index
    %13 = memref.load %arg5[%c0_7, %c0_8] : memref<1x1xf32, #tpu.memory_space<smem>>
    %14 = arith.mulf %12, %5 : vector<1x128xf32>
    %15 = vector.shape_cast %14 : vector<1x128xf32> to vector<1x1x128xf32>
    %cst_9 = arith.constant dense<0.000000e+00> : vector<1xf32>
    %16 = vector.multi_reduction <add>, %15, %cst_9 [1, 2] : vector<1x1x128xf32> to vector<1xf32>
    %17 = vector.shape_cast %16 : vector<1xf32> to vector<1x1x1xf32>
    %18 = vector.extract %17[0, 0, 0] : f32 from vector<1x1x1xf32>
    %cst_10 = arith.constant 0.000000e+00 : f32
    %19 = arith.subf %cst_10, %18 : f32
    %20 = arith.addf %13, %19 : f32
    %c0_11 = arith.constant 0 : index
    %c0_12 = arith.constant 0 : index
    %21 = memref.load %arg5[%c0_11, %c0_12] : memref<1x1xf32, #tpu.memory_space<smem>>
    memref.store %20, %arg5[%c0_11, %c0_12] : memref<1x1xf32, #tpu.memory_space<smem>>
    %c0_13 = arith.constant 0 : index
    %c0_14 = arith.constant 0 : index
    %22 = memref.load %arg6[%c0_13, %c0_14] : memref<1x1xf32, #tpu.memory_space<smem>>
    %23 = vector.shape_cast %5 : vector<1x128xf32> to vector<1x1x128xf32>
    %cst_15 = arith.constant dense<0.000000e+00> : vector<1xf32>
    %24 = vector.multi_reduction <add>, %23, %cst_15 [1, 2] : vector<1x1x128xf32> to vector<1xf32>
    %25 = vector.shape_cast %24 : vector<1xf32> to vector<1x1x1xf32>
    %26 = vector.extract %25[0, 0, 0] : f32 from vector<1x1x1xf32>
    %27 = arith.addf %22, %26 : f32
    %c0_16 = arith.constant 0 : index
    %c0_17 = arith.constant 0 : index
    %28 = memref.load %arg6[%c0_16, %c0_17] : memref<1x1xf32, #tpu.memory_space<smem>>
    memref.store %27, %arg6[%c0_16, %c0_17] : memref<1x1xf32, #tpu.memory_space<smem>>
    %c0_i32_18 = arith.constant 0 : i32
    %29 = arith.cmpi eq, %arg0, %c0_i32_18 : i32
    %30 = arith.extui %29 : i1 to i32
    %c0_i32_19 = arith.constant 0 : i32
    %31 = arith.cmpi ne, %30, %c0_i32_19 : i32
    scf.if %31 {
      %c0_20 = arith.constant 0 : index
      %c0_21 = arith.constant 0 : index
      %32 = memref.load %arg5[%c0_20, %c0_21] : memref<1x1xf32, #tpu.memory_space<smem>>
      %c0_22 = arith.constant 0 : index
      %c0_23 = arith.constant 0 : index
      %33 = memref.load %arg6[%c0_22, %c0_23] : memref<1x1xf32, #tpu.memory_space<smem>>
      %34 = arith.divf %32, %33 : f32
      %c0_24 = arith.constant 0 : index
      %c0_25 = arith.constant 0 : index
      %35 = memref.load %arg4[%c0_24, %c0_25] : memref<1x1xf32, #tpu.memory_space<smem>>
      memref.store %34, %arg4[%c0_24, %c0_25] : memref<1x1xf32, #tpu.memory_space<smem>>
    } else {
    }
    return
  }
  func.func @transform_0(%arg0: i32) -> (i32, i32) {
    %c0_i32 = arith.constant 0 : i32
    %c0_i32_0 = arith.constant 0 : i32
    return %c0_i32, %arg0 : i32, i32
  }
  func.func @transform_1(%arg0: i32) -> (i32, i32) {
    %c0_i32 = arith.constant 0 : i32
    %c0_i32_0 = arith.constant 0 : i32
    return %c0_i32, %arg0 : i32, i32
  }
  func.func @transform_2(%arg0: i32) -> (i32, i32) {
    %c0_i32 = arith.constant 0 : i32
    %c0_i32_0 = arith.constant 0 : i32
    return %c0_i32, %arg0 : i32, i32
  }
  func.func @transform_3(%arg0: i32) -> (i32, i32) {
    %c0_i32 = arith.constant 0 : i32
    %c0_i32_0 = arith.constant 0 : i32
    %c0_i32_1 = arith.constant 0 : i32
    return %c0_i32, %c0_i32_0 : i32, i32
  }
}

</mosaic_0001>

<llo_original>
// kernel: tpu_custom_call.1
$region0: #{tpu_custom_call.1}
  #allocation0 [shape = 'u32[]', space=smem, size = 0x4, offset = 0x4, fixed_abs, tag = 'smem constant byte address 0x4 - core index']
  #allocation1 [shape = 'u32[72,128]{1,0:T(1,128)}', space=vmem, size = 0x9000, scoped, tag = 'internal scratch']
  #allocation2 [shape = 'f32[1,1]{1,0:T(1,128)}', space=smem, size = 0x200, scoped, tag = 'scratch operand']
  #allocation3 [shape = 'f32[1,1]{1,0:T(1,128)}', space=smem, size = 0x200, scoped, tag = 'scratch operand']
  %s0 = inlined_call_operand.hbm [shape: f32[6,128], index: 0, kind: input, shape index: {}]
  %s1 = inlined_call_operand.hbm [shape: s32[1,128], index: 1, kind: input, shape index: {}]
  %s2 = inlined_call_operand.vmem [shape: f32[1,128], index: 2, kind: input, shape index: {}]
  %s3 = inlined_call_operand.hbm [shape: f32[1,1], index: 3, kind: output, shape index: {}]
  %s4 = sld [smem:[#allocation0]]
  $region38: #{tpu_custom_call.1} parent=0
    _
  %s6 = ssub.s32 1, %s4
  %s7 = scalar_select 0, %s6, %s4
  $region1: #{tpu_custom_call.1} parent=0
    #allocation4 [shape = 'u8[4096]{0}', space=vmem, size = 0x1000, scoped, tag = 'input window, operand 0, single buffered']
    #allocation5 [shape = 's32[1]{0}', space=sflag, size = 0x4, scoped, tag = 'scoped memory for tpu_custom_call.1']
    #allocation6 [shape = 's32[1]{0}', space=sflag, size = 0x4, scoped, tag = 'scoped memory for tpu_custom_call.1']
    #allocation7 [shape = 'u8[512]{0}', space=vmem, size = 0x400, scoped, tag = 'input window, operand 1, single buffered']
    #allocation8 [shape = 's32[1]{0}', space=sflag, size = 0x4, scoped, tag = 'scoped memory for tpu_custom_call.1']
    #allocation9 [shape = 'u8[512]{0}', space=smem, size = 0x200, scoped, tag = 'output window, operand 0, single buffered']
    %8 = vsyncpa [#allocation5], 0
    %9 = vsyncpa [#allocation8], 0
    %10 = vsyncpa [#allocation6], 0
    // Predicated region
    $region2: #{tpu_custom_call.1} parent=1 // pred_check
      _
    $region3: #{tpu_custom_call.1} parent=1 // pred_check_branch
      %12 = sbr.rel (0) target = $region5
    $region4: #{tpu_custom_call.1} parent=1 // pred_region
      %14 = vsyncadd [#allocation5], 0
      %s16 = sshll.u32 %s0, 4
      %s17 = int_to_ptr.hbm [resolvable:$true] %s16
      %s18 = sshll.u32 [#allocation4], 4
      %s19 = int_to_ptr.vmem [resolvable:$true] %s18
      %21 = dma.hbm_to_vmem [thread:$0]  %s17, 128, %s19, [#allocation5]
    $region5: #{tpu_custom_call.1} parent=1 // pred_fallthru
      _
    // Predicated region
    $region6: #{tpu_custom_call.1} parent=1 // pred_check
      _
    $region7: #{tpu_custom_call.1} parent=1 // pred_check_branch
      %23 = sbr.rel (0) target = $region9
    $region8: #{tpu_custom_call.1} parent=1 // pred_region
      %25 = vsyncadd [#allocation8], 0
      %s27 = sshll.u32 %s1, 4
      %s28 = int_to_ptr.hbm [resolvable:$true] %s27
      %s29 = sshll.u32 [#allocation7], 4
      %s30 = int_to_ptr.vmem [resolvable:$true] %s29
      %32 = dma.hbm_to_vmem [thread:$0]  %s28, 16, %s30, [#allocation8]
    $region9: #{tpu_custom_call.1} parent=1 // pred_fallthru
      _
    // Predicated region
    $region10: #{tpu_custom_call.1} parent=1 // pred_check
      _
    $region11: #{tpu_custom_call.1} parent=1 // pred_check_branch
      %34 = sbr.rel (0) target = $region13
    $region12: #{tpu_custom_call.1} parent=1 // pred_region
      _
    $region13: #{tpu_custom_call.1} parent=1 // pred_fallthru
      _
    // Predicated region
    $region14: #{tpu_custom_call.1} parent=1 // pred_check
      _
    $region15: #{tpu_custom_call.1} parent=1 // pred_check_branch
      %36 = sbr.rel (0) target = $region17
    $region16: #{tpu_custom_call.1} parent=1 // pred_region
      %38 = dma.done [#allocation5], 128
    $region17: #{tpu_custom_call.1} parent=1 // pred_fallthru
      _
    // Predicated region
    $region18: #{tpu_custom_call.1} parent=1 // pred_check
      _
    $region19: #{tpu_custom_call.1} parent=1 // pred_check_branch
      %40 = sbr.rel (0) target = $region21
    $region20: #{tpu_custom_call.1} parent=1 // pred_region
      %42 = dma.done [#allocation8], 16
    $region21: #{tpu_custom_call.1} parent=1 // pred_fallthru
      _
    %p43 = scmp.eq.s32.totalorder 0, 0
    // Predicated region
    $region22: #{tpu_custom_call.1} parent=1 // pred_check
      %p44 = pneg %p43
    $region23: #{tpu_custom_call.1} parent=1 // pred_check_branch
      %46 = sbr.rel (%p44) target = $region25
    $region24: #{tpu_custom_call.1} parent=1 // pred_region
      %s47 = scalar_lea.smem [#allocation2], 0
      %48 = sst [smem:[%s47]] 0.0
      %s49 = scalar_lea.smem [#allocation3], 0
      %50 = sst [smem:[%s49]] 0.0
    $region25: #{tpu_custom_call.1} parent=1 // pred_fallthru
      _
    %v51 = vld [vmem:[#allocation4] sm:$0x3f]
    %v52 = vld [vmem:[#allocation7] sm:$0x1]
    %v53 = vld [vmem:[%s2] sm:$0x1]
    %v54 = vlaneseq
    %v55 = vshrl.u32 %v54, 7
    %v56 = vperm.slane %v52, 0
    %vm57 = vcmp.eq.s32.totalorder %v55, %v56
    %v58 = vsel %vm57, %v51, 0.0
    %vm59 = vcmask 1045504
    %v60 = vsel %vm59, %v58, 0.0
    %v61 = vrot.slane %v60, 4
    %v62 = vadd.f32 %v60, %v61
    %v63 = vrot.slane %v62, 2
    %v64 = vadd.f32 %v62, %v63
    %v65 = vrot.slane %v64, 1
    %v66 = vadd.f32 %v64, %v65
    %s67 = sld [smem:[#allocation2]]
    %v68 = vmul.f32 %v66, %v53
    %vm69 = vcmask 1040384
    %v70 = vsel %vm69, %v68, 0.0
    %71 = vadd.xlane.f32.xlu0 %v70
    %v72 = vpop.xlane.xlu0 %71
    %v73 = vrot.slane %v72, 4
    %v74 = vadd.f32 %v72, %v73
    %v75 = vrot.slane %v74, 2
    %v76 = vadd.f32 %v74, %v75
    %v77 = vrot.slane %v76, 1
    %v78 = vadd.f32 %v76, %v77
    %s79 = vtos %v78
    %s80 = ssub.f32 0.0, %s79
    %s81 = sadd.f32 %s67, %s80
    %s82 = scalar_lea.smem [#allocation2], 0
    %83 = sst [smem:[%s82]] %s81
    %s84 = sld [smem:[#allocation3]]
    %v85 = vsel %vm69, %v53, 0.0
    %86 = vadd.xlane.f32.xlu0 %v85
    %v87 = vpop.xlane.xlu0 %86
    %v88 = vrot.slane %v87, 4
    %v89 = vadd.f32 %v87, %v88
    %v90 = vrot.slane %v89, 2
    %v91 = vadd.f32 %v89, %v90
    %v92 = vrot.slane %v91, 1
    %v93 = vadd.f32 %v91, %v92
    %s94 = vtos %v93
    %s95 = sadd.f32 %s84, %s94
    %s96 = scalar_lea.smem [#allocation3], 0
    %97 = sst [smem:[%s96]] %s95
    // Predicated region
    $region26: #{tpu_custom_call.1} parent=1 // pred_check
      %p98 = pneg %p43
    $region27: #{tpu_custom_call.1} parent=1 // pred_check_branch
      %100 = sbr.rel (%p98) target = $region29
    $region28: #{tpu_custom_call.1} parent=1 // pred_region
      %s101 = sld [smem:[#allocation2]]
      %s102 = sld [smem:[#allocation3]]
      %v103 = vstv %s102
      %v104 = vrcp.pop %v103
      %v105 = vmul.f32 %v103, %v104
      %v106 = vsub.f32 1.0, %v105
      %v107 = vmul.f32 %v104, %v106
      %v108 = vadd.f32 %v104, %v107
      %vm109 = vweird.f32 %v103
      %vm110 = vweird.f32 %v104
      %vm111 = vmor %vm109, %vm110
      %v112 = vsel %vm111, %v104, %v108
      %v113 = vand.u32 2147483647, %v103
      %vm114 = vcmp.eq.f32.partialorder %v113, 8.507059e+37
      %v115 = vand.u32 %v103, 2147483648
      %v116 = vor.u32 1.1754944e-38, %v115
      %v117 = vsel %vm114, %v116, %v112
      %s118 = vtos %v117
      %s119 = smul.f32 %s101, %s118
      %s120 = scalar_lea.smem [#allocation9], 0
      %121 = sst [smem:[%s120]] %s119
    $region29: #{tpu_custom_call.1} parent=1 // pred_fallthru
      _
    // Predicated region
    $region30: #{tpu_custom_call.1} parent=1 // pred_check
      _
    $region31: #{tpu_custom_call.1} parent=1 // pred_check_branch
      %123 = sbr.rel (0) target = $region33
    $region32: #{tpu_custom_call.1} parent=1 // pred_region
      %125 = vsyncadd [#allocation6], 0
      %s127 = sshll.u32 %s3, 4
      %s128 = int_to_ptr.hbm [resolvable:$true] %s127
      %130 = dma.smem_to_hbm [#allocation9], 16, %s128, [#allocation6]
    $region33: #{tpu_custom_call.1} parent=1 // pred_fallthru
      _
    // Predicated region
    $region34: #{tpu_custom_call.1} parent=1 // pred_check
      _
    $region35: #{tpu_custom_call.1} parent=1 // pred_check_branch
      %132 = sbr.rel (0) target = $region37
    $region36: #{tpu_custom_call.1} parent=1 // pred_region
      %134 = dma.done [#allocation6], 16
    $region37: #{tpu_custom_call.1} parent=1 // pred_fallthru
      _
    %135 = sfence
    %136 = vsyncpa [#allocation5], 1
    %137 = vsyncpa [#allocation8], 1
    %138 = vsyncpa [#allocation6], 1

</llo_original>
